<compile_context>
chip_gen: v7x
topology: tpu7x:2x2x1
jax: 0.10.0
libtpu: 0.0.40
codegen_flags: <defaults>
</compile_context>

<pallas_src>
import functools

import jax
import jax.numpy as jnp
from jax.experimental import pallas as pl
from jax.experimental.pallas import tpu as pltpu

LANE = 128            # TPU lane width — last dim of every tile.
MAX_TILE_ROWS = 1024  # (1024, 128) f32 block = 512 KiB; past the pipeline-overhead knee.


def _focal_kernel(x_ref, t_ref, out_ref, *, alpha, gamma, n_valid, tile_rows,
                  need_mask):
    x = x_ref[...].astype(jnp.float32)
    t = t_ref[...].astype(jnp.float32)

    # Numerically stable BCE-with-logits (identical formula to PyTorch).
    ce = jnp.maximum(x, 0.0) - x * t + jnp.log(1.0 + jnp.exp(-jnp.abs(x)))
    p_t = jnp.exp(-ce)
    one_minus_pt = 1.0 - p_t

    # (1 - p_t) ** gamma, specialised at trace time on the static gamma.
    if gamma == 1.0:
        mod = one_minus_pt
    elif float(gamma).is_integer() and 1.0 < gamma <= 4.0:
        mod = one_minus_pt
        for _ in range(int(gamma) - 1):
            mod = mod * one_minus_pt
    else:
        # General (fractional) gamma: x**g = exp(g*log(x)), 0-safe (ce=0 -> base=0).
        safe = jnp.maximum(one_minus_pt, 1e-30)
        mod = jnp.where(one_minus_pt > 0.0, jnp.exp(gamma * jnp.log(safe)), 0.0)

    focal = mod * ce  # alpha is folded into the per-tile partial below.

    if need_mask:
        # Zero contributions from padded / out-of-bounds elements of the ragged
        # last tile (their logits may be garbage; jnp.where is a select, so any
        # NaN/Inf in the masked-off branch is discarded).
        i = pl.program_id(0)
        row = jax.lax.broadcasted_iota(jnp.int32, focal.shape, 0)
        lane = jax.lax.broadcasted_iota(jnp.int32, focal.shape, 1)
        gidx = (i * tile_rows + row) * LANE + lane
        focal = jnp.where(gidx < n_valid, focal, 0.0)

    # Per-tile partial sum: reduce over rows (VPU adds), keep it lane-dense.
    colsum = alpha * jnp.sum(focal, axis=0, keepdims=True)          # (1, 128)
    # Place it in sublane 0 of an (8, 128)-aligned output block (zeros elsewhere)
    # so output stores stay unmasked / tile-aligned.
    sub = jax.lax.broadcasted_iota(jnp.int32, (8, LANE), 0)
    out_ref[...] = jnp.where(sub == 0, colsum, 0.0)


def mask_focal_loss(pred, target, gamma=1.0, alpha=0.8):
    """Pallas implementation of MaskFocalLoss.forward — returns a scalar."""
    n = pred.size
    x = pred.reshape(-1)      # native dtype; cast happens inside the kernel
    t = target.reshape(-1)

    # Only needed when numel isn't a multiple of the lane width (rare); real
    # ragged tiles are handled by the in-kernel mask, not by padding.
    pad = (-n) % LANE
    if pad:
        x = jnp.pad(x, (0, pad))
        t = jnp.pad(t, (0, pad))
    rows = (n + pad) // LANE

    tile_rows = rows if rows < MAX_TILE_ROWS else MAX_TILE_ROWS
    num_tiles = (rows + tile_rows - 1) // tile_rows
    need_mask = (num_tiles * tile_rows * LANE) != n

    x2 = x.reshape(rows, LANE)
    t2 = t.reshape(rows, LANE)

    kernel = functools.partial(
        _focal_kernel, alpha=float(alpha), gamma=float(gamma),
        n_valid=n, tile_rows=tile_rows, need_mask=need_mask)

    partials = pl.pallas_call(
        kernel,
        out_shape=jax.ShapeDtypeStruct((num_tiles * 8, LANE), jnp.float32),
        grid_spec=pltpu.PrefetchScalarGridSpec(
            num_scalar_prefetch=0,
            grid=(num_tiles,),
            in_specs=[
                pl.BlockSpec((tile_rows, LANE), lambda i: (i, 0)),  # logits
                pl.BlockSpec((tile_rows, LANE), lambda i: (i, 0)),  # targets
            ],
            out_specs=pl.BlockSpec((8, LANE), lambda i: (i, 0)),
        ),
        compiler_params=pltpu.CompilerParams(
            dimension_semantics=("parallel",),      # independent tiles -> v7x megacore
            vmem_limit_bytes=32 * 1024 * 1024,      # headroom; < 64 MiB/TC on v7x
        ),
    )(x2, t2)

    # Tiny final combine (num_tiles*8*128 floats) + mean over the true count.
    return jnp.sum(partials) / n


def _reference(pred, target, gamma=1.0, alpha=0.8):
    x = pred.astype(jnp.float32)
    t = target.astype(jnp.float32)
    ce = jnp.maximum(x, 0.0) - x * t + jnp.log1p(jnp.exp(-jnp.abs(x)))
    p_t = jnp.exp(-ce)
    focal = alpha * (1.0 - p_t) ** gamma * ce
    return jnp.mean(focal)


if __name__ == "__main__":
    key = jax.random.PRNGKey(0)
    k1, k2, k3, k4 = jax.random.split(key, 4)

    # Test 1: small mask-like shape (N=2, C=4, H=W=16), f32, default alpha/gamma.
    pred1 = jax.random.normal(k1, (2, 4, 16, 16), dtype=jnp.float32)
    targ1 = (jax.random.uniform(k2, (2, 4, 16, 16)) > 0.5).astype(jnp.float32)
    out1 = jax.block_until_ready(mask_focal_loss(pred1, targ1, gamma=1.0, alpha=0.8))
    ref1 = _reference(pred1, targ1, gamma=1.0, alpha=0.8)
    assert jnp.allclose(out1, ref1, atol=1e-5, rtol=1e-4), (out1, ref1)

    # Test 2: ragged element count (exercises in-kernel masking), bf16 logits
    # streamed natively, gamma=2 / alpha=0.25.
    pred2 = jax.random.normal(k3, (3, 2, 15, 15), dtype=jnp.float32).astype(jnp.bfloat16)
    targ2 = (jax.random.uniform(k4, (3, 2, 15, 15)) > 0.5).astype(jnp.float32)
    out2 = jax.block_until_ready(mask_focal_loss(pred2, targ2, gamma=2.0, alpha=0.25))
    ref2 = _reference(pred2, targ2, gamma=2.0, alpha=0.25)
    assert jnp.allclose(out2, ref2, atol=1e-4, rtol=1e-3), (out2, ref2)

    print("KERNEL_OK")
</pallas_src>

<mosaic_0001>
module attributes {stable_mosaic.version = 11 : i64} {
  func.func @_focal_kernel(%arg0: i32, %arg1: memref<16x128xf32, #tpu.memory_space<vmem>>, %arg2: memref<16x128xf32, #tpu.memory_space<vmem>>, %arg3: memref<8x128xf32, #tpu.memory_space<vmem>>) attributes {dimension_semantics = [#tpu.dimension_semantics<parallel>], iteration_bounds = array<i64: 1>, scalar_prefetch = 0 : i64, scratch_operands = 0 : i64, tpu.core_type = #tpu.core_type<tc>, window_params = [{transform_indices = @transform_0, window_bounds = array<i64: 16, 128>}, {transform_indices = @transform_1, window_bounds = array<i64: 16, 128>}, {transform_indices = @transform_2, window_bounds = array<i64: 8, 128>}]} {
    %c0 = arith.constant 0 : index
    %c0_0 = arith.constant 0 : index
    %0 = vector.load %arg1[%c0, %c0_0] : memref<16x128xf32, #tpu.memory_space<vmem>>, vector<16x128xf32>
    %c0_1 = arith.constant 0 : index
    %c0_2 = arith.constant 0 : index
    %1 = vector.load %arg2[%c0_1, %c0_2] : memref<16x128xf32, #tpu.memory_space<vmem>>, vector<16x128xf32>
    %cst = arith.constant 0.000000e+00 : f32
    %2 = vector.broadcast %cst : f32 to vector<16x128xf32>
    %3 = arith.maximumf %0, %2 : vector<16x128xf32>
    %4 = arith.mulf %0, %1 : vector<16x128xf32>
    %5 = arith.subf %3, %4 : vector<16x128xf32>
    %6 = math.absf %0 : vector<16x128xf32>
    %cst_3 = arith.constant 0.000000e+00 : f32
    %7 = vector.broadcast %cst_3 : f32 to vector<16x128xf32>
    %8 = arith.subf %7, %6 : vector<16x128xf32>
    %9 = math.exp %8 : vector<16x128xf32>
    %cst_4 = arith.constant 1.000000e+00 : f32
    %10 = vector.broadcast %cst_4 : f32 to vector<16x128xf32>
    %11 = arith.addf %10, %9 : vector<16x128xf32>
    %12 = math.log %11 : vector<16x128xf32>
    %13 = arith.addf %5, %12 : vector<16x128xf32>
    %cst_5 = arith.constant 0.000000e+00 : f32
    %14 = vector.broadcast %cst_5 : f32 to vector<16x128xf32>
    %15 = arith.subf %14, %13 : vector<16x128xf32>
    %16 = math.exp %15 : vector<16x128xf32>
    %cst_6 = arith.constant 1.000000e+00 : f32
    %17 = vector.broadcast %cst_6 : f32 to vector<16x128xf32>
    %18 = arith.subf %17, %16 : vector<16x128xf32>
    %19 = arith.mulf %18, %13 : vector<16x128xf32>
    %cst_7 = arith.constant dense<0.000000e+00> : vector<128xf32>
    %20 = vector.multi_reduction <add>, %19, %cst_7 [0] : vector<16x128xf32> to vector<128xf32>
    %21 = vector.shape_cast %20 : vector<128xf32> to vector<1x128xf32>
    %cst_8 = arith.constant 8.000000e-01 : f32
    %22 = vector.broadcast %cst_8 : f32 to vector<1x128xf32>
    %23 = arith.mulf %22, %21 : vector<1x128xf32>
    %24 = tpu.iota {dimensions = array<i32: 0>} : vector<8x128xi32>
    %c0_i32 = arith.constant 0 : i32
    %25 = vector.broadcast %c0_i32 : i32 to vector<8x128xi32>
    %26 = arith.cmpi eq, %24, %25 : vector<8x128xi32>
    %cst_9 = arith.constant 0.000000e+00 : f32
    %27 = vector.shape_cast %23 : vector<1x128xf32> to vector<1x128xf32>
    %28 = vector.broadcast %27 : vector<1x128xf32> to vector<8x128xf32>
    %29 = vector.broadcast %cst_9 : f32 to vector<8x128xf32>
    %30 = arith.select %26, %28, %29 : vector<8x128xi1>, vector<8x128xf32>
    %c0_10 = arith.constant 0 : index
    %c0_11 = arith.constant 0 : index
    %31 = vector.load %arg3[%c0_10, %c0_11] : memref<8x128xf32, #tpu.memory_space<vmem>>, vector<8x128xf32>
    tpu.vector_store %arg3[%c0_10, %c0_11], %30 {strides = array<i32>} : memref<8x128xf32, #tpu.memory_space<vmem>>, vector<8x128xf32>,
    return
  }
  func.func @transform_0(%arg0: i32) -> (i32, i32) {
    %c0_i32 = arith.constant 0 : i32
    %c0_i32_0 = arith.constant 0 : i32
    return %arg0, %c0_i32 : i32, i32
  }
  func.func @transform_1(%arg0: i32) -> (i32, i32) {
    %c0_i32 = arith.constant 0 : i32
    %c0_i32_0 = arith.constant 0 : i32
    return %arg0, %c0_i32 : i32, i32
  }
  func.func @transform_2(%arg0: i32) -> (i32, i32) {
    %c0_i32 = arith.constant 0 : i32
    %c0_i32_0 = arith.constant 0 : i32
    return %arg0, %c0_i32 : i32, i32
  }
}

</mosaic_0001>

<llo_original>
// kernel: tpu_custom_call.1
$region0: #{tpu_custom_call.1}
  #allocation0 [shape = 'u32[]', space=smem, size = 0x4, offset = 0x4, fixed_abs, tag = 'smem constant byte address 0x4 - core index']
  #allocation1 [shape = 'u32[144,128]{1,0:T(1,128)}', space=vmem, size = 0x12000, scoped, tag = 'internal scratch']
  %s0 = inlined_call_operand.hbm [shape: f32[16,128], index: 0, kind: input, shape index: {}]
  %s1 = inlined_call_operand.hbm [shape: f32[16,128], index: 1, kind: input, shape index: {}]
  %s2 = inlined_call_operand.hbm [shape: f32[8,128], index: 2, kind: output, shape index: {}]
  %s3 = sld [smem:[#allocation0]]
  $region26: #{tpu_custom_call.1} parent=0
    _
  %s5 = ssub.s32 1, %s3
  %s6 = scalar_select 0, %s5, %s3
  $region1: #{tpu_custom_call.1} parent=0
    #allocation2 [shape = 'u8[8192]{0}', space=vmem, size = 0x2000, scoped, tag = 'input window, operand 0, single buffered']
    #allocation3 [shape = 's32[1]{0}', space=sflag, size = 0x4, scoped, tag = 'scoped memory for tpu_custom_call.1']
    #allocation4 [shape = 's32[1]{0}', space=sflag, size = 0x4, scoped, tag = 'scoped memory for tpu_custom_call.1']
    #allocation5 [shape = 'u8[8192]{0}', space=vmem, size = 0x2000, scoped, tag = 'input window, operand 1, single buffered']
    #allocation6 [shape = 's32[1]{0}', space=sflag, size = 0x4, scoped, tag = 'scoped memory for tpu_custom_call.1']
    #allocation7 [shape = 'u8[4096]{0}', space=vmem, size = 0x1000, scoped, tag = 'output window, operand 0, single buffered']
    %7 = vsyncpa [#allocation3], 0
    %8 = vsyncpa [#allocation6], 0
    %9 = vsyncpa [#allocation4], 0
    // Predicated region
    $region2: #{tpu_custom_call.1} parent=1 // pred_check
      _
    $region3: #{tpu_custom_call.1} parent=1 // pred_check_branch
      %11 = sbr.rel (0) target = $region5
    $region4: #{tpu_custom_call.1} parent=1 // pred_region
      %s13 = ssub.s32 256, 256
      %14 = vsyncadd [#allocation3], %s13
      %s15 = sshll.u32 [#allocation2], 4
      %s16 = int_to_ptr.vmem [resolvable:$true] %s15
      %21 = dma.hbm_to_vmem [thread:$0]  %s0, 256, %s16, [#allocation3], 128, 128, 8
    $region5: #{tpu_custom_call.1} parent=1 // pred_fallthru
      _
    // Predicated region
    $region6: #{tpu_custom_call.1} parent=1 // pred_check
      _
    $region7: #{tpu_custom_call.1} parent=1 // pred_check_branch
      %23 = sbr.rel (0) target = $region9
    $region8: #{tpu_custom_call.1} parent=1 // pred_region
      %s25 = ssub.s32 256, 256
      %26 = vsyncadd [#allocation6], %s25
      %s27 = sshll.u32 [#allocation5], 4
      %s28 = int_to_ptr.vmem [resolvable:$true] %s27
      %33 = dma.hbm_to_vmem [thread:$0]  %s1, 256, %s28, [#allocation6], 128, 128, 8
    $region9: #{tpu_custom_call.1} parent=1 // pred_fallthru
      _
    // Predicated region
    $region10: #{tpu_custom_call.1} parent=1 // pred_check
      _
    $region11: #{tpu_custom_call.1} parent=1 // pred_check_branch
      %35 = sbr.rel (0) target = $region13
    $region12: #{tpu_custom_call.1} parent=1 // pred_region
      %36 = dma.done [#allocation3], 256
    $region13: #{tpu_custom_call.1} parent=1 // pred_fallthru
      _
    // Predicated region
    $region14: #{tpu_custom_call.1} parent=1 // pred_check
      _
    $region15: #{tpu_custom_call.1} parent=1 // pred_check_branch
      %38 = sbr.rel (0) target = $region17
    $region16: #{tpu_custom_call.1} parent=1 // pred_region
      %39 = dma.done [#allocation6], 256
    $region17: #{tpu_custom_call.1} parent=1 // pred_fallthru
      _
    %v40 = vld [vmem:[#allocation2] sm:$0xff]
    %v41 = vld [vmem:[#allocation2 + $0x8] sm:$0xff]
    %v42 = vld [vmem:[#allocation5] sm:$0xff]
    %v43 = vld [vmem:[#allocation5 + $0x8] sm:$0xff]
    %v44 = vmax.f32 %v40, 0.0
    %v45 = vmax.f32 %v41, 0.0
    %v46 = vmul.f32 %v40, %v42
    %v47 = vmul.f32 %v41, %v43
    %v48 = vsub.f32 %v44, %v46
    %v49 = vsub.f32 %v45, %v47
    %v50 = vand.u32 2147483647, %v40
    %v51 = vand.u32 2147483647, %v41
    %v52 = vsub.f32 0.0, %v50
    %v53 = vsub.f32 0.0, %v51
    %v54 = vmul.f32 %v52, 1.442695
    %v55 = vpow.pop %v54
    %v56 = vmul.f32 %v53, 1.442695
    %v57 = vpow.pop %v56
    %v58 = vadd.f32 %v55, 1.0
    %v59 = vadd.f32 %v57, 1.0
    %v60 = vlog2.pop %v58
    %v61 = vmul.f32 %v60, 0.6931472
    %v62 = vlog2.pop %v59
    %v63 = vmul.f32 %v62, 0.6931472
    %v64 = vadd.f32 %v48, %v61
    %v65 = vadd.f32 %v49, %v63
    %v66 = vsub.f32 0.0, %v64
    %v67 = vsub.f32 0.0, %v65
    %v68 = vmul.f32 %v66, 1.442695
    %v69 = vpow.pop %v68
    %v70 = vmul.f32 %v67, 1.442695
    %v71 = vpow.pop %v70
    %v72 = vsub.f32 1.0, %v69
    %v73 = vsub.f32 1.0, %v71
    %v74 = vmul.f32 %v72, %v64
    %v75 = vmul.f32 %v73, %v65
    %v76 = vadd.f32 %v74, %v75
    %v77 = vrot.slane %v76, 4
    %v78 = vadd.f32 %v76, %v77
    %v79 = vrot.slane %v78, 2
    %v80 = vadd.f32 %v78, %v79
    %v81 = vrot.slane %v80, 1
    %v82 = vadd.f32 %v80, %v81
    %v83 = vmul.f32 %v82, 0.8
    %v84 = vlaneseq
    %v85 = vshrl.u32 %v84, 7
    %vm86 = vcmp.eq.s32.totalorder %v85, 0
    %v87 = vsel %vm86, %v83, 0.0
    %88 = vst [vmem:[#allocation7] sm:$0xff] %v87
    // Predicated region
    $region18: #{tpu_custom_call.1} parent=1 // pred_check
      _
    $region19: #{tpu_custom_call.1} parent=1 // pred_check_branch
      %90 = sbr.rel (0) target = $region21
    $region20: #{tpu_custom_call.1} parent=1 // pred_region
      %s92 = ssub.s32 128, 128
      %93 = vsyncadd [#allocation4], %s92
      %s95 = sshll.u32 [#allocation7], 4
      %s96 = int_to_ptr.vmem [resolvable:$true] %s95
      %98 = dma.vmem_to_hbm [thread:$0]  %s96, 128, %s2, [#allocation4]
    $region21: #{tpu_custom_call.1} parent=1 // pred_fallthru
      _
    // Predicated region
    $region22: #{tpu_custom_call.1} parent=1 // pred_check
      _
    $region23: #{tpu_custom_call.1} parent=1 // pred_check_branch
      %100 = sbr.rel (0) target = $region25
    $region24: #{tpu_custom_call.1} parent=1 // pred_region
      %101 = dma.done [#allocation4], 128
    $region25: #{tpu_custom_call.1} parent=1 // pred_fallthru
      _
    %102 = vsyncpa [#allocation3], 1
    %103 = vsyncpa [#allocation6], 1
    %104 = vsyncpa [#allocation4], 1

</llo_original>
